<compile_context>
chip_gen: v7x
topology: tpu7x:2x2x1
jax: 0.10.0
libtpu: 0.0.40
codegen_flags: <defaults>
</compile_context>

<pallas_src>
import functools

import jax
import jax.numpy as jnp
from jax.experimental import pallas as pl
from jax.experimental.pallas import tpu as pltpu


# ----------------------------------------------------------------------------
# trace-time helpers
# ----------------------------------------------------------------------------
def _largest_divisor_leq(n, cap):
    for t in range(min(n, cap), 0, -1):
        if n % t == 0:
            return t
    return 1


def _vmem_budget_bytes():
    """Per-step VMEM budget with headroom below physical VMEM.
    v5e/v6e: 128 MiB physical -> ~96 MiB budget; v7x: 64 MiB -> 48 MiB."""
    cap = 64 * 1024 * 1024
    try:
        cap = int(getattr(pltpu.get_tpu_info(), "vmem_capacity_bytes", cap))
    except Exception:
        pass
    return int(min(cap * 3 // 4, 100 * 1024 * 1024))


def _bilinear_matrix(in_size, out_size, scale_factor):
    """PyTorch upsample_bilinear2d rule (align_corners=False, explicit scale):
       src = (dst + 0.5) / scale - 0.5, clamped.  Returns [out, in]; rows sum to 1."""
    i = jnp.arange(out_size, dtype=jnp.float32)
    src = (i + 0.5) / float(scale_factor) - 0.5
    src = jnp.maximum(src, 0.0)
    i0 = jnp.minimum(jnp.floor(src).astype(jnp.int32), in_size - 1)
    i1 = jnp.minimum(i0 + 1, in_size - 1)
    lam = jnp.clip(src - i0.astype(jnp.float32), 0.0, 1.0)
    oh0 = jax.nn.one_hot(i0, in_size, dtype=jnp.float32)
    oh1 = jax.nn.one_hot(i1, in_size, dtype=jnp.float32)
    return (1.0 - lam)[:, None] * oh0 + lam[:, None] * oh1


def _avgpool_matrix(in_size, factor=2):
    """Separable 1-D mean-pool matrix [in/factor, in]; rows sum to 1."""
    out_size = in_size // factor
    rows = jnp.arange(out_size)
    cols = jnp.arange(in_size)
    return ((cols[None, :] // factor) == rows[:, None]).astype(jnp.float32) / factor


def _kron_spatial(Ah, Aw):
    """K[h*W+w, oh*Wo+ow] = Ah[oh,h] * Aw[ow,w]  ->  (H*W, Ho*Wo).
    Fuses both separable spatial contractions into one lane-dense matmul."""
    return jnp.einsum("oh,pw->hwop", Ah, Aw).reshape(
        Ah.shape[1] * Aw.shape[1], Ah.shape[0] * Aw.shape[0])


# ----------------------------------------------------------------------------
# Primary path: one fused kernel per batch element
#   r0 = x_b @ K0 ; r1 = x_b @ K1            (Kronecker spatial resample, f32 acc)
#   out_b = [ W0^T @ r0 ; W1^T @ r1 ] + bias (1x1 conv + fused channel concat)
# ----------------------------------------------------------------------------
def _fused_kernel(k0_ref, k1_ref, w0t_ref, w1t_ref, bias_ref, x_ref, o_ref):
    x = x_ref[0]                                                        # (Cin, HW) lane-dense
    r0 = jnp.dot(x, k0_ref[...], preferred_element_type=jnp.float32)   # (Cin, HoWo)
    r1 = jnp.dot(x, k1_ref[...], preferred_element_type=jnp.float32)
    y0 = jnp.dot(w0t_ref[...], r0.astype(w0t_ref.dtype),
                 preferred_element_type=jnp.float32)                   # (Cout, HoWo)
    y1 = jnp.dot(w1t_ref[...], r1.astype(w1t_ref.dtype),
                 preferred_element_type=jnp.float32)
    # one full-block lane-dense store (no half-channel / masked partial stores)
    o_ref[0] = (jnp.concatenate([y0, y1], axis=0) + bias_ref[...]).astype(o_ref.dtype)


def _fused_forward(xp, K0, K1, w0t, w1t, bias, out_dtype, vmem_budget):
    B, Cin, HW = xp.shape
    HoWo = K0.shape[1]
    Cout2 = bias.shape[0]
    return pl.pallas_call(
        _fused_kernel,
        out_shape=jax.ShapeDtypeStruct((B, Cout2, HoWo), out_dtype),
        grid_spec=pltpu.PrefetchScalarGridSpec(
            num_scalar_prefetch=0,
            grid=(B,),
            in_specs=[
                pl.BlockSpec(K0.shape, lambda b: (0, 0)),
                pl.BlockSpec(K1.shape, lambda b: (0, 0)),
                pl.BlockSpec(w0t.shape, lambda b: (0, 0)),
                pl.BlockSpec(w1t.shape, lambda b: (0, 0)),
                pl.BlockSpec(bias.shape, lambda b: (0, 0)),
                pl.BlockSpec((1, Cin, HW), lambda b: (b, 0, 0)),
            ],
            out_specs=pl.BlockSpec((1, Cout2, HoWo), lambda b: (b, 0, 0)),
        ),
        compiler_params=pltpu.CompilerParams(
            dimension_semantics=("parallel",),
            vmem_limit_bytes=vmem_budget),
    )(K0, K1, w0t, w1t, bias, xp)


# ----------------------------------------------------------------------------
# Fallback path (fused working set exceeds VMEM): two kernels with
# lane-dense intermediates and VMEM-budget-derived tiles.
# ----------------------------------------------------------------------------
def _dual_resize_kernel(k0_ref, k1_ref, x_ref, o0_ref, o1_ref):
    x = x_ref[...]                                                      # (NB, HW)
    o0_ref[...] = jnp.dot(x, k0_ref[...],
                          preferred_element_type=jnp.float32).astype(o0_ref.dtype)
    o1_ref[...] = jnp.dot(x, k1_ref[...],
                          preferred_element_type=jnp.float32).astype(o1_ref.dtype)


def _pick_plane_block(N, HW, HoWo, xbytes, obytes, kbytes, budget):
    fixed = 2 * 2 * HW * HoWo * kbytes                       # K0, K1 (buffered, conservative)
    per_plane = 2 * (HW * xbytes + 2 * HoWo * obytes) + 2 * HoWo * 4
    cap = max(1, (budget - fixed) // per_plane)
    cap = int(min(cap, 1024, N))
    if N >= 16:
        cap = min(cap, N // 2)               # keep >=2 grid steps so megacore can split
    for nb in range(cap - cap % 8, 0, -8):   # sublane-aligned second-minor block dim
        if N % nb == 0:
            return nb
    # TODO(synk): pad N = B*Cin with zero planes when it has no aligned divisor.
    return N if N <= cap else _largest_divisor_leq(N, cap)


def _dual_resize(xp2, K0, K1, inter_dtype, vmem_budget):
    """xp2: (N, HW) lane-dense planes -> (r0, r1), each (N, HoWo) lane-dense."""
    N, HW = xp2.shape
    HoWo = K0.shape[1]
    NB = _pick_plane_block(N, HW, HoWo, xp2.dtype.itemsize,
                           jnp.dtype(inter_dtype).itemsize, K0.dtype.itemsize,
                           vmem_budget)
    return pl.pallas_call(
        _dual_resize_kernel,
        out_shape=(jax.ShapeDtypeStruct((N, HoWo), inter_dtype),
                   jax.ShapeDtypeStruct((N, HoWo), inter_dtype)),
        grid_spec=pltpu.PrefetchScalarGridSpec(
            num_scalar_prefetch=0,
            grid=(N // NB,),
            in_specs=[
                pl.BlockSpec(K0.shape, lambda i: (0, 0)),
                pl.BlockSpec(K1.shape, lambda i: (0, 0)),
                pl.BlockSpec((NB, HW), lambda i: (i, 0)),
            ],
            out_specs=[
                pl.BlockSpec((NB, HoWo), lambda i: (i, 0)),
                pl.BlockSpec((NB, HoWo), lambda i: (i, 0)),
            ],
        ),
        compiler_params=pltpu.CompilerParams(
            dimension_semantics=("parallel",),
            vmem_limit_bytes=vmem_budget),
    )(K0, K1, xp2)


def _conv_concat_kernel(w0t_ref, w1t_ref, bias_ref, r0_ref, r1_ref, o_ref):
    y0 = jnp.dot(w0t_ref[...], r0_ref[0], preferred_element_type=jnp.float32)
    y1 = jnp.dot(w1t_ref[...], r1_ref[0], preferred_element_type=jnp.float32)
    o_ref[0] = (jnp.concatenate([y0, y1], axis=0) + bias_ref[...]).astype(o_ref.dtype)


def _pick_lane_tile(HoWo, Cin, Cout, ibytes, obytes, budget):
    fixed = 2 * (2 * Cout * Cin * ibytes + 2 * Cout * 4)
    per_lane = 2 * (2 * Cin * ibytes + 2 * Cout * obytes) + 2 * Cout * 4
    cap = max(128, (budget - fixed) // per_lane)
    if HoWo <= cap:
        return HoWo
    t = (int(cap) // 128) * 128
    while t >= 128:
        if HoWo % t == 0:
            return t
        t -= 128
    # TODO(synk): pad HoWo to a multiple of 128 for awkward sizes instead of
    #             degrading to masked sub-128-lane stores.
    return _largest_divisor_leq(HoWo, int(cap))


def _conv1x1_concat(r0, r1, w0t, w1t, bias, out_dtype, vmem_budget):
    """r0, r1: (B, Cin, HoWo) -> (B, 2*Cout, HoWo)."""
    B, Cin, HoWo = r0.shape
    Cout = w0t.shape[0]
    Cout2 = 2 * Cout
    THW = _pick_lane_tile(HoWo, Cin, Cout, r0.dtype.itemsize,
                          jnp.dtype(out_dtype).itemsize, vmem_budget)
    return pl.pallas_call(
        _conv_concat_kernel,
        out_shape=jax.ShapeDtypeStruct((B, Cout2, HoWo), out_dtype),
        grid_spec=pltpu.PrefetchScalarGridSpec(
            num_scalar_prefetch=0,
            grid=(B, HoWo // THW),
            in_specs=[
                pl.BlockSpec(w0t.shape, lambda b, j: (0, 0)),
                pl.BlockSpec(w1t.shape, lambda b, j: (0, 0)),
                pl.BlockSpec(bias.shape, lambda b, j: (0, 0)),
                pl.BlockSpec((1, Cin, THW), lambda b, j: (b, 0, j)),
                pl.BlockSpec((1, Cin, THW), lambda b, j: (b, 0, j)),
            ],
            out_specs=pl.BlockSpec((1, Cout2, THW), lambda b, j: (b, 0, j)),
        ),
        compiler_params=pltpu.CompilerParams(
            dimension_semantics=("parallel", "parallel"),
            vmem_limit_bytes=vmem_budget),
    )(w0t, w1t, bias, r0, r1)


# ----------------------------------------------------------------------------
# Synthetic backbone parameters (stand-in for the external backbone):
#   f0 = conv1x1(x, w0, b0)              at full resolution
#   f1 = conv1x1(avgpool2(x), w1, b1)    at half resolution
# ----------------------------------------------------------------------------
def make_backbone_params(cin, cout, key):
    k0, k1, k2, k3 = jax.random.split(key, 4)
    return {
        "w0": jax.random.normal(k0, (cin, cout), jnp.float32) * 0.1,
        "b0": jax.random.normal(k1, (cout,), jnp.float32) * 0.1,
        "w1": jax.random.normal(k2, (cin, cout), jnp.float32) * 0.1,
        "b1": jax.random.normal(k3, (cout,), jnp.float32) * 0.1,
    }


# ----------------------------------------------------------------------------
# BackboneWrapper.forward (reordered/fused, numerically equivalent)
# ----------------------------------------------------------------------------
def backbone_wrapper_forward(params, x, scale_factors=(0.5, 1.0),
                             compute_dtype=jnp.float32,
                             intermediate_dtype=None,
                             force_two_kernel=False):
    # Spatial resampling with rows summing to 1 commutes with the 1x1 conv (the
    # bias passes through), so x is resampled FIRST (per branch, via one Kronecker
    # matmul that also folds in the backbone's 2x avg-pool), and the conv +
    # channel concat run at the final resolution.  compute_dtype=bfloat16 halves
    # DMA bytes / uses the bf16 MXU on v6e/v7x (accumulation + bias stay f32).
    B, Cin, H, W = x.shape
    sf0, sf1 = scale_factors
    Cout = params["w0"].shape[1]
    out_dtype = x.dtype
    inter_dtype = compute_dtype if intermediate_dtype is None else intermediate_dtype

    # branch 0: bilinear(sf0) of the full-res feature
    Ho0, Wo0 = int(H * sf0), int(W * sf0)
    Ah0 = _bilinear_matrix(H, Ho0, sf0)
    Aw0 = _bilinear_matrix(W, Wo0, sf0)

    # branch 1: backbone's 2x avg-pool folded in; sf1 == 1.0 composes no extra resize
    Hp, Wp = H // 2, W // 2
    Ph, Pw = _avgpool_matrix(H, 2), _avgpool_matrix(W, 2)
    if sf1 == 1.0:
        Ah1, Aw1 = Ph, Pw
        Ho1, Wo1 = Hp, Wp
    else:
        Ho1, Wo1 = int(Hp * sf1), int(Wp * sf1)
        Ah1 = _bilinear_matrix(Hp, Ho1, sf1) @ Ph
        Aw1 = _bilinear_matrix(Wp, Wo1, sf1) @ Pw

    assert (Ho0, Wo0) == (Ho1, Wo1), "branch spatial sizes must match for channel concat"
    Ho, Wo = Ho0, Wo0
    HW, HoWo = H * W, Ho * Wo

    # Kronecker resize matrices: composed entirely in f32, one cast at the end.
    K0 = _kron_spatial(Ah0, Aw0).astype(compute_dtype)            # (HW, HoWo)
    K1 = _kron_spatial(Ah1, Aw1).astype(compute_dtype)
    w0t = params["w0"].T.astype(compute_dtype)                    # (Cout, Cin)
    w1t = params["w1"].T.astype(compute_dtype)
    bias = jnp.concatenate([params["b0"], params["b1"]]).reshape(2 * Cout, 1)
    bias = bias.astype(jnp.float32)                               # bias add stays f32

    budget = _vmem_budget_bytes()
    cb = jnp.dtype(compute_dtype).itemsize
    ob = jnp.dtype(out_dtype).itemsize

    # fused-path per-step working set: resident K/W + double-buffered x/out blocks + f32 temps
    fused_bytes = (2 * 2 * HW * HoWo * cb
                   + 2 * (2 * Cout * Cin * cb + 2 * Cout * 4)
                   + 2 * Cin * HW * cb
                   + 2 * 2 * Cout * HoWo * ob
                   + 2 * Cin * HoWo * 4 + 2 * Cout * HoWo * 4)

    xp = x.reshape(B, Cin, HW).astype(compute_dtype)              # lane-dense, free reshape

    if fused_bytes <= budget and not force_two_kernel:
        # single kernel: resize + conv + concat; x read once, no HBM intermediates
        out = _fused_forward(xp, K0, K1, w0t, w1t, bias, out_dtype, budget)
    else:
        # fallback: lane-dense Kronecker resize over planes, then conv + concat.
        # TODO(synk): for very large H*W (Kronecker matrix no longer VMEM-friendly)
        #             add a separable (Ah @ x @ Aw^T) resize path.
        r0, r1 = _dual_resize(xp.reshape(B * Cin, HW), K0, K1, inter_dtype, budget)
        out = _conv1x1_concat(r0.reshape(B, Cin, HoWo), r1.reshape(B, Cin, HoWo),
                              w0t, w1t, bias, out_dtype, budget)

    return out.reshape(B, 2 * Cout, Ho, Wo)                       # free trailing-dim split


# ----------------------------------------------------------------------------
# Pure-JAX reference in the ORIGINAL op order (backbone convs at native
# resolution, then wrapper resize + concat) — validates the reorder/fusion.
# ----------------------------------------------------------------------------
def _reference_forward(params, x, scale_factors=(0.5, 1.0)):
    B, Cin, H, W = x.shape
    f0 = jnp.einsum("bchw,cd->bdhw", x, params["w0"]) + params["b0"][None, :, None, None]
    x_half = x.reshape(B, Cin, H // 2, 2, W // 2, 2).mean(axis=(3, 5))
    f1 = jnp.einsum("bchw,cd->bdhw", x_half, params["w1"]) + params["b1"][None, :, None, None]

    sf0, sf1 = scale_factors
    Ah0 = _bilinear_matrix(H, int(H * sf0), sf0)
    Aw0 = _bilinear_matrix(W, int(W * sf0), sf0)
    g0 = jnp.einsum("oh,bchw,qw->bcoq", Ah0, f0, Aw0)
    if sf1 == 1.0:
        g1 = f1
    else:
        Hp, Wp = H // 2, W // 2
        Ah1 = _bilinear_matrix(Hp, int(Hp * sf1), sf1)
        Aw1 = _bilinear_matrix(Wp, int(Wp * sf1), sf1)
        g1 = jnp.einsum("oh,bchw,qw->bcoq", Ah1, f1, Aw1)
    return jnp.concatenate([g0, g1], axis=1)


if __name__ == "__main__":
    key = jax.random.PRNGKey(0)
    kx, kp = jax.random.split(key)

    B, Cin, H, W = 2, 4, 16, 16
    Cout = 8
    x = jax.random.normal(kx, (B, Cin, H, W), jnp.float32)
    params = make_backbone_params(Cin, Cout, kp)

    ref = _reference_forward(params, x)

    # primary fully fused path
    fwd = jax.jit(functools.partial(backbone_wrapper_forward, scale_factors=(0.5, 1.0)))
    out = jax.block_until_ready(fwd(params, x))
    assert out.shape == (B, 2 * Cout, H // 2, W // 2), out.shape
    assert bool(jnp.all(jnp.isfinite(out)))
    assert jnp.allclose(out, ref, rtol=1e-2, atol=1e-2), float(jnp.max(jnp.abs(out - ref)))

    # two-kernel fallback path (used when the fused working set exceeds VMEM)
    fwd2 = jax.jit(functools.partial(backbone_wrapper_forward, scale_factors=(0.5, 1.0),
                                     force_two_kernel=True))
    out2 = jax.block_until_ready(fwd2(params, x))
    assert out2.shape == out.shape
    assert jnp.allclose(out2, ref, rtol=1e-2, atol=1e-2), float(jnp.max(jnp.abs(out2 - ref)))

    print("KERNEL_OK")
</pallas_src>

<mosaic_0001>
module attributes {stable_mosaic.version = 11 : i64} {
  func.func @_fused_kernel(%arg0: i32, %arg1: memref<256x64xf32, #tpu.memory_space<vmem>>, %arg2: memref<256x64xf32, #tpu.memory_space<vmem>>, %arg3: memref<8x4xf32, #tpu.memory_space<vmem>>, %arg4: memref<8x4xf32, #tpu.memory_space<vmem>>, %arg5: memref<16x1xf32, #tpu.memory_space<vmem>>, %arg6: memref<1x4x256xf32, #tpu.memory_space<vmem>>, %arg7: memref<1x16x64xf32, #tpu.memory_space<vmem>>) attributes {dimension_semantics = [#tpu.dimension_semantics<parallel>], iteration_bounds = array<i64: 2>, scalar_prefetch = 0 : i64, scratch_operands = 0 : i64, tpu.core_type = #tpu.core_type<tc>, window_params = [{pipeline_mode = #tpu.pipeline_mode<synchronous>, transform_indices = @transform_0, window_bounds = array<i64: 256, 64>}, {pipeline_mode = #tpu.pipeline_mode<synchronous>, transform_indices = @transform_1, window_bounds = array<i64: 256, 64>}, {pipeline_mode = #tpu.pipeline_mode<synchronous>, transform_indices = @transform_2, window_bounds = array<i64: 8, 4>}, {pipeline_mode = #tpu.pipeline_mode<synchronous>, transform_indices = @transform_3, window_bounds = array<i64: 8, 4>}, {pipeline_mode = #tpu.pipeline_mode<synchronous>, transform_indices = @transform_4, window_bounds = array<i64: 16, 1>}, {transform_indices = @transform_5, window_bounds = array<i64: 1, 4, 256>}, {transform_indices = @transform_6, window_bounds = array<i64: 1, 16, 64>}]} {
    %c0 = arith.constant 0 : index
    %c0_0 = arith.constant 0 : index
    %c0_1 = arith.constant 0 : index
    %0 = vector.load %arg6[%c0, %c0_0, %c0_1] : memref<1x4x256xf32, #tpu.memory_space<vmem>>, vector<1x4x256xf32>
    %1 = vector.shape_cast %0 : vector<1x4x256xf32> to vector<4x256xf32>
    %c0_2 = arith.constant 0 : index
    %c0_3 = arith.constant 0 : index
    %2 = vector.load %arg1[%c0_2, %c0_3] : memref<256x64xf32, #tpu.memory_space<vmem>>, vector<256x64xf32>
    %cst = arith.constant dense<0.000000e+00> : vector<4x64xf32>
    %3 = tpu.matmul %1, %2, %cst {dimension_numbers = #tpu.dot_dimension_numbers<[1], [0], [0], [1], [0, 0, 1, 1], [], []>} : vector<4x256xf32>, vector<256x64xf32>, vector<4x64xf32> -> vector<4x64xf32>
    %c0_4 = arith.constant 0 : index
    %c0_5 = arith.constant 0 : index
    %4 = vector.load %arg2[%c0_4, %c0_5] : memref<256x64xf32, #tpu.memory_space<vmem>>, vector<256x64xf32>
    %cst_6 = arith.constant dense<0.000000e+00> : vector<4x64xf32>
    %5 = tpu.matmul %1, %4, %cst_6 {dimension_numbers = #tpu.dot_dimension_numbers<[1], [0], [0], [1], [0, 0, 1, 1], [], []>} : vector<4x256xf32>, vector<256x64xf32>, vector<4x64xf32> -> vector<4x64xf32>
    %c0_7 = arith.constant 0 : index
    %c0_8 = arith.constant 0 : index
    %6 = vector.load %arg3[%c0_7, %c0_8] : memref<8x4xf32, #tpu.memory_space<vmem>>, vector<8x4xf32>
    %cst_9 = arith.constant dense<0.000000e+00> : vector<8x64xf32>
    %7 = tpu.matmul %6, %3, %cst_9 {dimension_numbers = #tpu.dot_dimension_numbers<[1], [0], [0], [1], [0, 0, 1, 1], [], []>} : vector<8x4xf32>, vector<4x64xf32>, vector<8x64xf32> -> vector<8x64xf32>
    %c0_10 = arith.constant 0 : index
    %c0_11 = arith.constant 0 : index
    %8 = vector.load %arg4[%c0_10, %c0_11] : memref<8x4xf32, #tpu.memory_space<vmem>>, vector<8x4xf32>
    %cst_12 = arith.constant dense<0.000000e+00> : vector<8x64xf32>
    %9 = tpu.matmul %8, %5, %cst_12 {dimension_numbers = #tpu.dot_dimension_numbers<[1], [0], [0], [1], [0, 0, 1, 1], [], []>} : vector<8x4xf32>, vector<4x64xf32>, vector<8x64xf32> -> vector<8x64xf32>
    %10 = tpu.concatenate %7, %9 in 0 : vector<8x64xf32>, vector<8x64xf32> -> vector<16x64xf32>
    %c0_13 = arith.constant 0 : index
    %c0_14 = arith.constant 0 : index
    %11 = vector.load %arg5[%c0_13, %c0_14] : memref<16x1xf32, #tpu.memory_space<vmem>>, vector<16x1xf32>
    %12 = vector.broadcast %11 : vector<16x1xf32> to vector<16x64xf32>
    %13 = arith.addf %10, %12 : vector<16x64xf32>
    %c0_15 = arith.constant 0 : index
    %c0_16 = arith.constant 0 : index
    %c0_17 = arith.constant 0 : index
    %14 = vector.load %arg7[%c0_15, %c0_16, %c0_17] : memref<1x16x64xf32, #tpu.memory_space<vmem>>, vector<1x16x64xf32>
    %15 = vector.shape_cast %14 : vector<1x16x64xf32> to vector<16x64xf32>
    %16 = vector.shape_cast %13 : vector<16x64xf32> to vector<1x16x64xf32>
    tpu.vector_store %arg7[%c0_15, %c0_16, %c0_17], %16 {strides = array<i32>} : memref<1x16x64xf32, #tpu.memory_space<vmem>>, vector<1x16x64xf32>,
    return
  }
  func.func @transform_0(%arg0: i32) -> (i32, i32) {
    %c0_i32 = arith.constant 0 : i32
    %c0_i32_0 = arith.constant 0 : i32
    %c0_i32_1 = arith.constant 0 : i32
    return %c0_i32, %c0_i32_0 : i32, i32
  }
  func.func @transform_1(%arg0: i32) -> (i32, i32) {
    %c0_i32 = arith.constant 0 : i32
    %c0_i32_0 = arith.constant 0 : i32
    %c0_i32_1 = arith.constant 0 : i32
    return %c0_i32, %c0_i32_0 : i32, i32
  }
  func.func @transform_2(%arg0: i32) -> (i32, i32) {
    %c0_i32 = arith.constant 0 : i32
    %c0_i32_0 = arith.constant 0 : i32
    %c0_i32_1 = arith.constant 0 : i32
    return %c0_i32, %c0_i32_0 : i32, i32
  }
  func.func @transform_3(%arg0: i32) -> (i32, i32) {
    %c0_i32 = arith.constant 0 : i32
    %c0_i32_0 = arith.constant 0 : i32
    %c0_i32_1 = arith.constant 0 : i32
    return %c0_i32, %c0_i32_0 : i32, i32
  }
  func.func @transform_4(%arg0: i32) -> (i32, i32) {
    %c0_i32 = arith.constant 0 : i32
    %c0_i32_0 = arith.constant 0 : i32
    %c0_i32_1 = arith.constant 0 : i32
    return %c0_i32, %c0_i32_0 : i32, i32
  }
  func.func @transform_5(%arg0: i32) -> (i32, i32, i32) {
    %c0_i32 = arith.constant 0 : i32
    %c0_i32_0 = arith.constant 0 : i32
    %c0_i32_1 = arith.constant 0 : i32
    return %arg0, %c0_i32, %c0_i32_0 : i32, i32, i32
  }
  func.func @transform_6(%arg0: i32) -> (i32, i32, i32) {
    %c0_i32 = arith.constant 0 : i32
    %c0_i32_0 = arith.constant 0 : i32
    %c0_i32_1 = arith.constant 0 : i32
    return %arg0, %c0_i32, %c0_i32_0 : i32, i32, i32
  }
}

</mosaic_0001>

<llo_original>
// kernel: backbone_wrapper_forward.1
$region0: #{backbone_wrapper_forward.1}
  #allocation0 [shape = 'u32[]', space=smem, size = 0x4, offset = 0x4, fixed_abs, tag = 'smem constant byte address 0x4 - core index']
  #allocation1 [shape = 'u32[144,128]{1,0:T(1,128)}', space=vmem, size = 0x12000, scoped, tag = 'internal scratch']
  %s0 = inlined_call_operand.vmem [shape: f32[256,64], index: 0, kind: input, shape index: {}]
  %s1 = inlined_call_operand.vmem [shape: f32[256,64], index: 1, kind: input, shape index: {}]
  %s2 = inlined_call_operand.vmem [shape: f32[8,4], index: 2, kind: input, shape index: {}]
  %s3 = inlined_call_operand.vmem [shape: f32[8,4], index: 3, kind: input, shape index: {}]
  %s4 = inlined_call_operand.vmem [shape: f32[16,1], index: 4, kind: input, shape index: {}]
  %s5 = inlined_call_operand.vmem [shape: f32[2,4,256], index: 5, kind: input, shape index: {}]
  %s6 = inlined_call_operand.vmem [shape: f32[2,16,64], index: 6, kind: output, shape index: {}]
  %s7 = sld [smem:[#allocation0]]
  $region57: #{backbone_wrapper_forward.1} parent=0
    _
  %s9 = ssub.s32 1, %s7
  %s10 = scalar_select 0, %s9, %s7
  loop: start=0, step=1, limit=4
  $region2: #{backbone_wrapper_forward.1} parent=0 // loop_pre_header
    _
  $region3: #{backbone_wrapper_forward.1} parent=0 // loop_header
    %s12 = sphi 0, %s16
    %p13 = scmp.ge.s32.totalorder %s12, 4
    %s20 = sphi 0, %s20
    %s22 = sphi 0, %s20
    %s23 = sphi 0, %s22
    %s37 = sphi 0, %s23
    %s41 = sphi 0, %s41
    %s43 = sphi 0, %s41
    %s44 = sphi 0, %s43
    %s58 = sphi 0, %s44
    %s62 = sphi 0, %s62
    %s64 = sphi 0, %s62
    %s65 = sphi 0, %s64
    %s79 = sphi 0, %s65
    %s83 = sphi 0, %s83
    %s85 = sphi 0, %s83
    %s86 = sphi 0, %s85
    %s100 = sphi 0, %s86
    %s104 = sphi 0, %s104
    %s106 = sphi 0, %s104
    %s107 = sphi 0, %s106
    %s121 = sphi 0, %s107
    %s127 = sphi 0, %s129
    %s130 = sphi 0, %s127
    %s131 = sphi 0, %s130
    %s147 = sphi 0, %s131
    %s153 = sphi 0, %s155
    %s156 = sphi 0, %s153
    %s157 = sphi 0, %s156
    %s173 = sphi 0, %s157
  $region4: #{backbone_wrapper_forward.1} parent=0 // loop_header_branch
    %15 = sbr.rel (%p13) target = $region8
  $region5: #{backbone_wrapper_forward.1} parent=0 // loop_body
    %s17 = ssub.s32 %s12, 1
    %s18 = ssub.s32 %s12, 2
    %s19 = sadd.s32 %s12, 1
    %s21 = sadd.s32 %s20, 1
    %p24 = scmp.eq.s32.totalorder %s12, 1
    %p25 = scmp.ne.s32.totalorder %s20, %s22
    %p26 = scmp.eq.s32.totalorder %s12, 0
    %p27 = por %p25, %p26
    %p28 = scmp.ne.s32.totalorder %s20, %s22
    %p29 = scmp.eq.s32.totalorder %s17, 1
    %p30 = por %p28, %p29
    %p31 = scmp.ne.s32.totalorder %s22, %s23
    %p32 = scmp.eq.s32.totalorder %s17, 0
    %p33 = por %p31, %p32
    %p34 = scmp.ne.s32.totalorder %s22, %s23
    %p35 = scmp.eq.s32.totalorder %s18, 1
    %p36 = por %p34, %p35
    %p38 = scmp.ne.s32.totalorder %s23, %s37
    %p39 = scmp.eq.s32.totalorder %s18, 0
    %p40 = por %p38, %p39
    %s42 = sadd.s32 %s41, 1
    %p45 = scmp.eq.s32.totalorder %s12, 1
    %p46 = scmp.ne.s32.totalorder %s41, %s43
    %p47 = scmp.eq.s32.totalorder %s12, 0
    %p48 = por %p46, %p47
    %p49 = scmp.ne.s32.totalorder %s41, %s43
    %p50 = scmp.eq.s32.totalorder %s17, 1
    %p51 = por %p49, %p50
    %p52 = scmp.ne.s32.totalorder %s43, %s44
    %p53 = scmp.eq.s32.totalorder %s17, 0
    %p54 = por %p52, %p53
    %p55 = scmp.ne.s32.totalorder %s43, %s44
    %p56 = scmp.eq.s32.totalorder %s18, 1
    %p57 = por %p55, %p56
    %p59 = scmp.ne.s32.totalorder %s44, %s58
    %p60 = scmp.eq.s32.totalorder %s18, 0
    %p61 = por %p59, %p60
    %s63 = sadd.s32 %s62, 1
    %p66 = scmp.eq.s32.totalorder %s12, 1
    %p67 = scmp.ne.s32.totalorder %s62, %s64
    %p68 = scmp.eq.s32.totalorder %s12, 0
    %p69 = por %p67, %p68
    %p70 = scmp.ne.s32.totalorder %s62, %s64
    %p71 = scmp.eq.s32.totalorder %s17, 1
    %p72 = por %p70, %p71
    %p73 = scmp.ne.s32.totalorder %s64, %s65
    %p74 = scmp.eq.s32.totalorder %s17, 0
    %p75 = por %p73, %p74
    %p76 = scmp.ne.s32.totalorder %s64, %s65
    %p77 = scmp.eq.s32.totalorder %s18, 1
    %p78 = por %p76, %p77
    %p80 = scmp.ne.s32.totalorder %s65, %s79
    %p81 = scmp.eq.s32.totalorder %s18, 0
    %p82 = por %p80, %p81
    %s84 = sadd.s32 %s83, 1
    %p87 = scmp.eq.s32.totalorder %s12, 1
    %p88 = scmp.ne.s32.totalorder %s83, %s85
    %p89 = scmp.eq.s32.totalorder %s12, 0
    %p90 = por %p88, %p89
    %p91 = scmp.ne.s32.totalorder %s83, %s85
    %p92 = scmp.eq.s32.totalorder %s17, 1
    %p93 = por %p91, %p92
    %p94 = scmp.ne.s32.totalorder %s85, %s86
    %p95 = scmp.eq.s32.totalorder %s17, 0
    %p96 = por %p94, %p95
    %p97 = scmp.ne.s32.totalorder %s85, %s86
    %p98 = scmp.eq.s32.totalorder %s18, 1
    %p99 = por %p97, %p98
    %p101 = scmp.ne.s32.totalorder %s86, %s100
    %p102 = scmp.eq.s32.totalorder %s18, 0
    %p103 = por %p101, %p102
    %s105 = sadd.s32 %s104, 1
    %p108 = scmp.eq.s32.totalorder %s12, 1
    %p109 = scmp.ne.s32.totalorder %s104, %s106
    %p110 = scmp.eq.s32.totalorder %s12, 0
    %p111 = por %p109, %p110
    %p112 = scmp.ne.s32.totalorder %s104, %s106
    %p113 = scmp.eq.s32.totalorder %s17, 1
    %p114 = por %p112, %p113
    %p115 = scmp.ne.s32.totalorder %s106, %s107
    %p116 = scmp.eq.s32.totalorder %s17, 0
    %p117 = por %p115, %p116
    %p118 = scmp.ne.s32.totalorder %s106, %s107
    %p119 = scmp.eq.s32.totalorder %s18, 1
    %p120 = por %p118, %p119
    %p122 = scmp.ne.s32.totalorder %s107, %s121
    %p123 = scmp.eq.s32.totalorder %s18, 0
    %p124 = por %p122, %p123
    %s125 = ssub.s32 %s12, %s19
    %p126 = scmp.eq.s32.totalorder %s125, 0
    %s128 = sadd.s32 %s127, 1
    %s129 = scalar_select %p126, %s127, %s128
    %p132 = pneg %p126
    %p133 = scmp.eq.s32.totalorder %s12, 1
    %p134 = por %p132, %p133
    %p135 = scmp.ne.s32.totalorder %s127, %s130
    %p136 = scmp.eq.s32.totalorder %s12, 0
    %p137 = por %p135, %p136
    %p138 = scmp.ne.s32.totalorder %s127, %s130
    %p139 = scmp.eq.s32.totalorder %s17, 1
    %p140 = por %p138, %p139
    %p141 = scmp.ne.s32.totalorder %s130, %s131
    %p142 = scmp.eq.s32.totalorder %s17, 0
    %p143 = por %p141, %p142
    %p144 = scmp.ne.s32.totalorder %s130, %s131
    %p145 = scmp.eq.s32.totalorder %s18, 1
    %p146 = por %p144, %p145
    %p148 = scmp.ne.s32.totalorder %s131, %s147
    %p149 = scmp.eq.s32.totalorder %s18, 0
    %p150 = por %p148, %p149
    %s151 = ssub.s32 %s12, %s19
    %p152 = scmp.eq.s32.totalorder %s151, 0
    %s154 = sadd.s32 %s153, 1
    %s155 = scalar_select %p152, %s153, %s154
    %p158 = pneg %p152
    %p159 = scmp.eq.s32.totalorder %s12, 1
    %p160 = por %p158, %p159
    %p161 = scmp.ne.s32.totalorder %s153, %s156
    %p162 = scmp.eq.s32.totalorder %s12, 0
    %p163 = por %p161, %p162
    %p164 = scmp.ne.s32.totalorder %s153, %s156
    %p165 = scmp.eq.s32.totalorder %s17, 1
    %p166 = por %p164, %p165
    %p167 = scmp.ne.s32.totalorder %s156, %s157
    %p168 = scmp.eq.s32.totalorder %s17, 0
    %p169 = por %p167, %p168
    %p170 = scmp.ne.s32.totalorder %s156, %s157
    %p171 = scmp.eq.s32.totalorder %s18, 1
    %p172 = por %p170, %p171
    %p174 = scmp.ne.s32.totalorder %s157, %s173
    %p175 = scmp.eq.s32.totalorder %s18, 0
    %p176 = por %p174, %p175
    %p177 = scmp.le.s32.totalorder 1, %s12
    %p178 = scmp.lt.s32.totalorder %s12, 3
    %p179 = pnand %p177, %p178
    %p180 = pneg %p179
    // Predicated region
    $region9: #{backbone_wrapper_forward.1} parent=5 // pred_check
      _
    $region10: #{backbone_wrapper_forward.1} parent=5 // pred_check_branch
      %182 = sbr.rel (%p179) target = $region12
    $region11: #{backbone_wrapper_forward.1} parent=5 // pred_region
      %s183 = ssub.s32 %s12, 1
      // Predicated region
      $region13: #{backbone_wrapper_forward.1} parent=11 // pred_check
        %p184 = pneg %p33
      $region14: #{backbone_wrapper_forward.1} parent=11 // pred_check_branch
        %186 = sbr.rel (%p184) target = $region16
      $region15: #{backbone_wrapper_forward.1} parent=11 // pred_region
        _
      $region16: #{backbone_wrapper_forward.1} parent=11 // pred_fallthru
        _
      // Predicated region
      $region17: #{backbone_wrapper_forward.1} parent=11 // pred_check
        %p187 = pneg %p54
      $region18: #{backbone_wrapper_forward.1} parent=11 // pred_check_branch
        %189 = sbr.rel (%p187) target = $region20
      $region19: #{backbone_wrapper_forward.1} parent=11 // pred_region
        _
      $region20: #{backbone_wrapper_forward.1} parent=11 // pred_fallthru
        _
      // Predicated region
      $region21: #{backbone_wrapper_forward.1} parent=11 // pred_check
        %p190 = pneg %p75
      $region22: #{backbone_wrapper_forward.1} parent=11 // pred_check_branch
        %192 = sbr.rel (%p190) target = $region24
      $region23: #{backbone_wrapper_forward.1} parent=11 // pred_region
        _
      $region24: #{backbone_wrapper_forward.1} parent=11 // pred_fallthru
        _
      // Predicated region
      $region25: #{backbone_wrapper_forward.1} parent=11 // pred_check
        %p193 = pneg %p96
      $region26: #{backbone_wrapper_forward.1} parent=11 // pred_check_branch
        %195 = sbr.rel (%p193) target = $region28
      $region27: #{backbone_wrapper_forward.1} parent=11 // pred_region
        _
      $region28: #{backbone_wrapper_forward.1} parent=11 // pred_fallthru
        _
      // Predicated region
      $region29: #{backbone_wrapper_forward.1} parent=11 // pred_check
        %p196 = pneg %p117
      $region30: #{backbone_wrapper_forward.1} parent=11 // pred_check_branch
        %198 = sbr.rel (%p196) target = $region32
      $region31: #{backbone_wrapper_forward.1} parent=11 // pred_region
        _
      $region32: #{backbone_wrapper_forward.1} parent=11 // pred_fallthru
        _
    $region12: #{backbone_wrapper_forward.1} parent=5 // pred_fallthru
      _
    %p199 = scmp.lt.s32.totalorder %s12, 2
    // Predicated region
    $region33: #{backbone_wrapper_forward.1} parent=5 // pred_check
      %p200 = pneg %p199
    $region34: #{backbone_wrapper_forward.1} parent=5 // pred_check_branch
      %202 = sbr.rel (%p200) target = $region36
    $region35: #{backbone_wrapper_forward.1} parent=5 // pred_region
      // Predicated region
      $region37: #{backbone_wrapper_forward.1} parent=35 // pred_check
        %p203 = pneg %p137
      $region38: #{backbone_wrapper_forward.1} parent=35 // pred_check_branch
        %205 = sbr.rel (%p203) target = $region40
      $region39: #{backbone_wrapper_forward.1} parent=35 // pred_region
        %p206 = scmp.lt.s32.totalorder %s12, 1
        %s207 = scalar_select %p206, %s12, 1
        %s208 = smul.addr %s207, 2
        %s209 = smul.addr %s208, 4
        %s210 = scalar_lea.vmem %s5, %s209
      $region40: #{backbone_wrapper_forward.1} parent=35 // pred_fallthru
        _
    $region36: #{backbone_wrapper_forward.1} parent=5 // pred_fallthru
      _
    %p211 = scmp.le.s32.totalorder 1, %s12
    %p212 = scmp.lt.s32.totalorder %s12, 3
    %p213 = pnand %p211, %p212
    %p214 = pneg %p213
    // Predicated region
    $region41: #{backbone_wrapper_forward.1} parent=5 // pred_check
      _
    $region42: #{backbone_wrapper_forward.1} parent=5 // pred_check_branch
      %216 = sbr.rel (%p213) target = $region44
    $region43: #{backbone_wrapper_forward.1} parent=5 // pred_region
      %s217 = ssub.s32 %s12, 1
      %p218 = pneg %p33
      %p219 = pneg %p30
      %p220 = pneg %p54
      %p221 = pneg %p51
      %p222 = pneg %p75
      %p223 = pneg %p72
      %p224 = pneg %p96
      %p225 = pneg %p93
      %p226 = pneg %p117
      %p227 = pneg %p114
      %p228 = scmp.lt.s32.totalorder %s17, 1
      %s229 = scalar_select %p228, %s17, 1
      %s230 = smul.addr %s229, 2
      %s231 = smul.addr %s230, 4
      %s232 = scalar_lea.vmem %s5, %s231
      %p233 = pneg %p143
      %p234 = pneg %p140
      %p235 = pneg %p169
      %p236 = pneg %p166
      %p237 = scmp.lt.s32.totalorder %s17, 1
      %s238 = scalar_select %p237, %s17, 1
      %s239 = smul.addr %s238, 2
      %s240 = smul.addr %s239, 8
      %s241 = scalar_lea.vmem %s6, %s240
      %p242 = scmp.lt.s32.totalorder %s17, 1
      %s243 = scalar_select %p242, %s17, 1
      %s244 = smul.addr %s243, 2
      %s245 = smul.addr %s244, 4
      %s246 = scalar_lea.vmem %s5, %s245
      %p247 = scmp.lt.s32.totalorder %s17, 1
      %s248 = scalar_select %p247, %s17, 1
      %s249 = smul.addr %s248, 2
      %s250 = smul.addr %s249, 8
      %s251 = scalar_lea.vmem %s6, %s250
      %v252 = vld [vmem:[%s246] sm:$0xff]
      %v253 = vld [vmem:[%s0] sm:$0xff]
      %v254 = vld [vmem:[%s0 + $0x8] sm:$0xff]
      %v255 = vld [vmem:[%s0 + $0x10] sm:$0xff]
      %v256 = vld [vmem:[%s0 + $0x18] sm:$0xff]
      %v257 = vld [vmem:[%s0 + $0x20] sm:$0xff]
      %v258 = vld [vmem:[%s0 + $0x28] sm:$0xff]
      %v259 = vld [vmem:[%s0 + $0x30] sm:$0xff]
      %v260 = vld [vmem:[%s0 + $0x38] sm:$0xff]
      %v261 = vld [vmem:[%s0 + $0x40] sm:$0xff]
      %v262 = vld [vmem:[%s0 + $0x48] sm:$0xff]
      %v263 = vld [vmem:[%s0 + $0x50] sm:$0xff]
      %v264 = vld [vmem:[%s0 + $0x58] sm:$0xff]
      %v265 = vld [vmem:[%s0 + $0x60] sm:$0xff]
      %v266 = vld [vmem:[%s0 + $0x68] sm:$0xff]
      %v267 = vld [vmem:[%s0 + $0x70] sm:$0xff]
      %v268 = vld [vmem:[%s0 + $0x78] sm:$0xff]
      %v269 = vld [vmem:[%s0 + $0x80] sm:$0xff]
      %v270 = vld [vmem:[%s0 + $0x88] sm:$0xff]
      %v271 = vld [vmem:[%s0 + $0x90] sm:$0xff]
      %v272 = vld [vmem:[%s0 + $0x98] sm:$0xff]
      %v273 = vld [vmem:[%s0 + $0xa0] sm:$0xff]
      %v274 = vld [vmem:[%s0 + $0xa8] sm:$0xff]
      %v275 = vld [vmem:[%s0 + $0xb0] sm:$0xff]
      %v276 = vld [vmem:[%s0 + $0xb8] sm:$0xff]
      %v277 = vld [vmem:[%s0 + $0xc0] sm:$0xff]
      %v278 = vld [vmem:[%s0 + $0xc8] sm:$0xff]
      %v279 = vld [vmem:[%s0 + $0xd0] sm:$0xff]
      %v280 = vld [vmem:[%s0 + $0xd8] sm:$0xff]
      %v281 = vld [vmem:[%s0 + $0xe0] sm:$0xff]
      %v282 = vld [vmem:[%s0 + $0xe8] sm:$0xff]
      %v283 = vld [vmem:[%s0 + $0xf0] sm:$0xff]
      %v284 = vld [vmem:[%s0 + $0xf8] sm:$0xff]
      %v286 = vcombine.high %v252, %v252
      %288 = vmatprep.subr.mxu0 0.0
      %289 = vmatpush1.msra.mxu0 %v253
      %290 = vmatprep.subr.mxu0 0.0
      %291 = vmatpush1.msra.mxu0 %v254
      %292 = vmatprep.subr.mxu0 0.0
      %293 = vmatpush1.msra.mxu0 %v255
      %294 = vmatprep.subr.mxu0 0.0
      %295 = vmatpush1.msra.mxu0 %v256
      %296 = vmatprep.subr.mxu0 0.0
      %297 = vmatpush1.msra.mxu0 %v257
      %298 = vmatprep.subr.mxu0 0.0
      %299 = vmatpush1.msra.mxu0 %v258
      %300 = vmatprep.subr.mxu0 0.0
      %301 = vmatpush1.msra.mxu0 %v259
      %302 = vmatprep.subr.mxu0 0.0
      %303 = vmatpush1.msra.mxu0 %v260
      %304 = vmatprep.subr.mxu0 0.0
      %305 = vmatpush1.msra.mxu0 %v261
      %306 = vmatprep.subr.mxu0 0.0
      %307 = vmatpush1.msra.mxu0 %v262
      %308 = vmatprep.subr.mxu0 0.0
      %309 = vmatpush1.msra.mxu0 %v263
      %310 = vmatprep.subr.mxu0 0.0
      %311 = vmatpush1.msra.mxu0 %v264
      %312 = vmatprep.subr.mxu0 0.0
      %313 = vmatpush1.msra.mxu0 %v265
      %314 = vmatprep.subr.mxu0 0.0
      %315 = vmatpush1.msra.mxu0 %v266
      %316 = vmatprep.subr.mxu0 0.0
      %317 = vmatpush1.msra.mxu0 %v267
      %318 = vmatprep.subr.mxu0 0.0
      %319 = vmatpush1.msra.mxu0 %v268
      %320 = vmatprep.subr.mxu0 0.0
      %321 = vmatpush1.msra.mxu0 %v269
      %322 = vmatprep.subr.mxu0 0.0
      %323 = vmatpush1.msra.mxu0 %v270
      %324 = vmatprep.subr.mxu0 0.0
      %325 = vmatpush1.msra.mxu0 %v271
      %326 = vmatprep.subr.mxu0 0.0
      %327 = vmatpush1.msra.mxu0 %v272
      %328 = vmatprep.subr.mxu0 0.0
      %329 = vmatpush1.msra.mxu0 %v273
      %330 = vmatprep.subr.mxu0 0.0
      %331 = vmatpush1.msra.mxu0 %v274
      %332 = vmatprep.subr.mxu0 0.0
      %333 = vmatpush1.msra.mxu0 %v275
      %334 = vmatprep.subr.mxu0 0.0
      %335 = vmatpush1.msra.mxu0 %v276
      %336 = vmatprep.subr.mxu0 0.0
      %337 = vmatpush1.msra.mxu0 %v277
      %338 = vmatprep.subr.mxu0 0.0
      %339 = vmatpush1.msra.mxu0 %v278
      %340 = vmatprep.subr.mxu0 0.0
      %341 = vmatpush1.msra.mxu0 %v279
      %342 = vmatprep.subr.mxu0 0.0
      %343 = vmatpush1.msra.mxu0 %v280
      %344 = vmatprep.subr.mxu0 0.0
      %345 = vmatpush1.msra.mxu0 %v281
      %346 = vmatprep.subr.mxu0 0.0
      %347 = vmatpush1.msra.mxu0 %v282
      %348 = vmatprep.subr.mxu0 0.0
      %349 = vmatpush1.msra.mxu0 %v283
      %350 = vmatprep.subr.mxu0 0.0
      %351 = vmatpush1.msra.mxu0 %v284
      %352 = vmatprep.mubr.f32.mxu0 %v286
      %353 = vmatmul.mubr.f32.gmra.mrb[0].mxu0 %v252
      %v354 = vpop.f32.mrb[0].mxu0
      %v355 = vadd.f32 0.0, %v354
      %v356 = vpop.f32.mrb[0].mxu0
      %357 = vdwg.mxu0
      %v358 = vld [vmem:[%s1] sm:$0xff]
      %v359 = vld [vmem:[%s1 + $0x8] sm:$0xff]
      %v360 = vld [vmem:[%s1 + $0x10] sm:$0xff]
      %v361 = vld [vmem:[%s1 + $0x18] sm:$0xff]
      %v362 = vld [vmem:[%s1 + $0x20] sm:$0xff]
      %v363 = vld [vmem:[%s1 + $0x28] sm:$0xff]
      %v364 = vld [vmem:[%s1 + $0x30] sm:$0xff]
      %v365 = vld [vmem:[%s1 + $0x38] sm:$0xff]
      %v366 = vld [vmem:[%s1 + $0x40] sm:$0xff]
      %v367 = vld [vmem:[%s1 + $0x48] sm:$0xff]
      %v368 = vld [vmem:[%s1 + $0x50] sm:$0xff]
      %v369 = vld [vmem:[%s1 + $0x58] sm:$0xff]
      %v370 = vld [vmem:[%s1 + $0x60] sm:$0xff]
      %v371 = vld [vmem:[%s1 + $0x68] sm:$0xff]
      %v372 = vld [vmem:[%s1 + $0x70] sm:$0xff]
      %v373 = vld [vmem:[%s1 + $0x78] sm:$0xff]
      %v374 = vld [vmem:[%s1 + $0x80] sm:$0xff]
      %v375 = vld [vmem:[%s1 + $0x88] sm:$0xff]
      %v376 = vld [vmem:[%s1 + $0x90] sm:$0xff]
      %v377 = vld [vmem:[%s1 + $0x98] sm:$0xff]
      %v378 = vld [vmem:[%s1 + $0xa0] sm:$0xff]
      %v379 = vld [vmem:[%s1 + $0xa8] sm:$0xff]
      %v380 = vld [vmem:[%s1 + $0xb0] sm:$0xff]
      %v381 = vld [vmem:[%s1 + $0xb8] sm:$0xff]
      %v382 = vld [vmem:[%s1 + $0xc0] sm:$0xff]
      %v383 = vld [vmem:[%s1 + $0xc8] sm:$0xff]
      %v384 = vld [vmem:[%s1 + $0xd0] sm:$0xff]
      %v385 = vld [vmem:[%s1 + $0xd8] sm:$0xff]
      %v386 = vld [vmem:[%s1 + $0xe0] sm:$0xff]
      %v387 = vld [vmem:[%s1 + $0xe8] sm:$0xff]
      %v388 = vld [vmem:[%s1 + $0xf0] sm:$0xff]
      %v389 = vld [vmem:[%s1 + $0xf8] sm:$0xff]
      %390 = vmatprep.subr.mxu0 0.0
      %391 = vmatpush1.msra.mxu0 %v358
      %392 = vmatprep.subr.mxu0 0.0
      %393 = vmatpush1.msra.mxu0 %v359
      %394 = vmatprep.subr.mxu0 0.0
      %395 = vmatpush1.msra.mxu0 %v360
      %396 = vmatprep.subr.mxu0 0.0
      %397 = vmatpush1.msra.mxu0 %v361
      %398 = vmatprep.subr.mxu0 0.0
      %399 = vmatpush1.msra.mxu0 %v362
      %400 = vmatprep.subr.mxu0 0.0
      %401 = vmatpush1.msra.mxu0 %v363
      %402 = vmatprep.subr.mxu0 0.0
      %403 = vmatpush1.msra.mxu0 %v364
      %404 = vmatprep.subr.mxu0 0.0
      %405 = vmatpush1.msra.mxu0 %v365
      %406 = vmatprep.subr.mxu0 0.0
      %407 = vmatpush1.msra.mxu0 %v366
      %408 = vmatprep.subr.mxu0 0.0
      %409 = vmatpush1.msra.mxu0 %v367
      %410 = vmatprep.subr.mxu0 0.0
      %411 = vmatpush1.msra.mxu0 %v368
      %412 = vmatprep.subr.mxu0 0.0
      %413 = vmatpush1.msra.mxu0 %v369
      %414 = vmatprep.subr.mxu0 0.0
      %415 = vmatpush1.msra.mxu0 %v370
      %416 = vmatprep.subr.mxu0 0.0
      %417 = vmatpush1.msra.mxu0 %v371
      %418 = vmatprep.subr.mxu0 0.0
      %419 = vmatpush1.msra.mxu0 %v372
      %420 = vmatprep.subr.mxu0 0.0
      %421 = vmatpush1.msra.mxu0 %v373
      %422 = vmatprep.subr.mxu0 0.0
      %423 = vmatpush1.msra.mxu0 %v374
      %424 = vmatprep.subr.mxu0 0.0
      %425 = vmatpush1.msra.mxu0 %v375
      %426 = vmatprep.subr.mxu0 0.0
      %427 = vmatpush1.msra.mxu0 %v376
      %428 = vmatprep.subr.mxu0 0.0
      %429 = vmatpush1.msra.mxu0 %v377
      %430 = vmatprep.subr.mxu0 0.0
      %431 = vmatpush1.msra.mxu0 %v378
      %432 = vmatprep.subr.mxu0 0.0
      %433 = vmatpush1.msra.mxu0 %v379
      %434 = vmatprep.subr.mxu0 0.0
      %435 = vmatpush1.msra.mxu0 %v380
      %436 = vmatprep.subr.mxu0 0.0
      %437 = vmatpush1.msra.mxu0 %v381
      %438 = vmatprep.subr.mxu0 0.0
      %439 = vmatpush1.msra.mxu0 %v382
      %440 = vmatprep.subr.mxu0 0.0
      %441 = vmatpush1.msra.mxu0 %v383
      %442 = vmatprep.subr.mxu0 0.0
      %443 = vmatpush1.msra.mxu0 %v384
      %444 = vmatprep.subr.mxu0 0.0
      %445 = vmatpush1.msra.mxu0 %v385
      %446 = vmatprep.subr.mxu0 0.0
      %447 = vmatpush1.msra.mxu0 %v386
      %448 = vmatprep.subr.mxu0 0.0
      %449 = vmatpush1.msra.mxu0 %v387
      %450 = vmatprep.subr.mxu0 0.0
      %451 = vmatpush1.msra.mxu0 %v388
      %452 = vmatprep.subr.mxu0 0.0
      %453 = vmatpush1.msra.mxu0 %v389
      %454 = vmatprep.mubr.f32.mxu0 %v286
      %455 = vmatmul.mubr.f32.gmra.mrb[0].mxu0 %v252
      %v456 = vpop.f32.mrb[0].mxu0
      %v457 = vadd.f32 0.0, %v456
      %v458 = vpop.f32.mrb[0].mxu0
      %459 = vdwg.mxu0
      %v460 = vld [vmem:[%s2] sm:$0xff]
      %vm461 = vcmask 31744
      %v463 = vsel %vm461, %v460, 0
      %vm465 = vcmask 1043456
      %v467 = vsel %vm465, %v355, 0
      %469 = vmatprep.subr.mxu0 0.0
      %470 = vmatpush1.msra.mxu0 %v467
      %471 = vmatprep.subr.mxu0 0.0
      %472 = vmatpush1.msra.mxu0 0.0
      %473 = vmatprep.subr.mxu0 0.0
      %474 = vmatpush1.msra.mxu0 0.0
      %475 = vmatprep.subr.mxu0 0.0
      %476 = vmatpush1.msra.mxu0 0.0
      %477 = vmatprep.subr.mxu0 0.0
      %478 = vmatpush1.msra.mxu0 0.0
      %479 = vmatprep.subr.mxu0 0.0
      %480 = vmatpush1.msra.mxu0 0.0
      %481 = vmatprep.subr.mxu0 0.0
      %482 = vmatpush1.msra.mxu0 0.0
      %483 = vmatprep.subr.mxu0 0.0
      %484 = vmatpush1.msra.mxu0 0.0
      %485 = vmatprep.subr.mxu0 0.0
      %486 = vmatpush1.msra.mxu0 0.0
      %487 = vmatprep.subr.mxu0 0.0
      %488 = vmatpush1.msra.mxu0 0.0
      %489 = vmatprep.subr.mxu0 0.0
      %490 = vmatpush1.msra.mxu0 0.0
      %491 = vmatprep.subr.mxu0 0.0
      %492 = vmatpush1.msra.mxu0 0.0
      %493 = vmatprep.subr.mxu0 0.0
      %494 = vmatpush1.msra.mxu0 0.0
      %495 = vmatprep.subr.mxu0 0.0
      %496 = vmatpush1.msra.mxu0 0.0
      %497 = vmatprep.subr.mxu0 0.0
      %498 = vmatpush1.msra.mxu0 0.0
      %499 = vmatprep.subr.mxu0 0.0
      %500 = vmatpush1.msra.mxu0 0.0
      %501 = vmatprep.subr.mxu0 0.0
      %502 = vmatpush1.msra.mxu0 0.0
      %503 = vmatprep.subr.mxu0 0.0
      %504 = vmatpush1.msra.mxu0 0.0
      %505 = vmatprep.subr.mxu0 0.0
      %506 = vmatpush1.msra.mxu0 0.0
      %507 = vmatprep.subr.mxu0 0.0
      %508 = vmatpush1.msra.mxu0 0.0
      %509 = vmatprep.subr.mxu0 0.0
      %510 = vmatpush1.msra.mxu0 0.0
      %511 = vmatprep.subr.mxu0 0.0
      %512 = vmatpush1.msra.mxu0 0.0
      %513 = vmatprep.subr.mxu0 0.0
      %514 = vmatpush1.msra.mxu0 0.0
      %515 = vmatprep.subr.mxu0 0.0
      %516 = vmatpush1.msra.mxu0 0.0
      %517 = vmatprep.subr.mxu0 0.0
      %518 = vmatpush1.msra.mxu0 0.0
      %519 = vmatprep.subr.mxu0 0.0
      %520 = vmatpush1.msra.mxu0 0.0
      %521 = vmatprep.subr.mxu0 0.0
      %522 = vmatpush1.msra.mxu0 0.0
      %523 = vmatprep.subr.mxu0 0.0
      %524 = vmatpush1.msra.mxu0 0.0
      %525 = vmatprep.subr.mxu0 0.0
      %526 = vmatpush1.msra.mxu0 0.0
      %527 = vmatprep.subr.mxu0 0.0
      %528 = vmatpush1.msra.mxu0 0.0
      %529 = vmatprep.subr.mxu0 0.0
      %530 = vmatpush1.msra.mxu0 0.0
      %531 = vmatprep.subr.mxu0 0.0
      %532 = vmatpush1.msra.mxu0 0.0
      %533 = vmatprep.mubr.f32.mxu0 0.0
      %534 = vmatmul.mubr.f32.gmra.mrb[0].mxu0 %v463
      %v535 = vpop.f32.mrb[0].mxu0
      %v536 = vadd.f32 0.0, %v535
      %v537 = vpop.f32.mrb[0].mxu0
      %538 = vdwg.mxu0
      %v539 = vld [vmem:[%s3] sm:$0xff]
      %v541 = vsel %vm461, %v539, 0
      %v544 = vsel %vm465, %v457, 0
      %546 = vmatprep.subr.mxu0 0.0
      %547 = vmatpush1.msra.mxu0 %v544
      %548 = vmatprep.subr.mxu0 0.0
      %549 = vmatpush1.msra.mxu0 0.0
      %550 = vmatprep.subr.mxu0 0.0
      %551 = vmatpush1.msra.mxu0 0.0
      %552 = vmatprep.subr.mxu0 0.0
      %553 = vmatpush1.msra.mxu0 0.0
      %554 = vmatprep.subr.mxu0 0.0
      %555 = vmatpush1.msra.mxu0 0.0
      %556 = vmatprep.subr.mxu0 0.0
      %557 = vmatpush1.msra.mxu0 0.0
      %558 = vmatprep.subr.mxu0 0.0
      %559 = vmatpush1.msra.mxu0 0.0
      %560 = vmatprep.subr.mxu0 0.0
      %561 = vmatpush1.msra.mxu0 0.0
      %562 = vmatprep.subr.mxu0 0.0
      %563 = vmatpush1.msra.mxu0 0.0
      %564 = vmatprep.subr.mxu0 0.0
      %565 = vmatpush1.msra.mxu0 0.0
      %566 = vmatprep.subr.mxu0 0.0
      %567 = vmatpush1.msra.mxu0 0.0
      %568 = vmatprep.subr.mxu0 0.0
      %569 = vmatpush1.msra.mxu0 0.0
      %570 = vmatprep.subr.mxu0 0.0
      %571 = vmatpush1.msra.mxu0 0.0
      %572 = vmatprep.subr.mxu0 0.0
      %573 = vmatpush1.msra.mxu0 0.0
      %574 = vmatprep.subr.mxu0 0.0
      %575 = vmatpush1.msra.mxu0 0.0
      %576 = vmatprep.subr.mxu0 0.0
      %577 = vmatpush1.msra.mxu0 0.0
      %578 = vmatprep.subr.mxu0 0.0
      %579 = vmatpush1.msra.mxu0 0.0
      %580 = vmatprep.subr.mxu0 0.0
      %581 = vmatpush1.msra.mxu0 0.0
      %582 = vmatprep.subr.mxu0 0.0
      %583 = vmatpush1.msra.mxu0 0.0
      %584 = vmatprep.subr.mxu0 0.0
      %585 = vmatpush1.msra.mxu0 0.0
      %586 = vmatprep.subr.mxu0 0.0
      %587 = vmatpush1.msra.mxu0 0.0
      %588 = vmatprep.subr.mxu0 0.0
      %589 = vmatpush1.msra.mxu0 0.0
      %590 = vmatprep.subr.mxu0 0.0
      %591 = vmatpush1.msra.mxu0 0.0
      %592 = vmatprep.subr.mxu0 0.0
      %593 = vmatpush1.msra.mxu0 0.0
      %594 = vmatprep.subr.mxu0 0.0
      %595 = vmatpush1.msra.mxu0 0.0
      %596 = vmatprep.subr.mxu0 0.0
      %597 = vmatpush1.msra.mxu0 0.0
      %598 = vmatprep.subr.mxu0 0.0
      %599 = vmatpush1.msra.mxu0 0.0
      %600 = vmatprep.subr.mxu0 0.0
      %601 = vmatpush1.msra.mxu0 0.0
      %602 = vmatprep.subr.mxu0 0.0
      %603 = vmatpush1.msra.mxu0 0.0
      %604 = vmatprep.subr.mxu0 0.0
      %605 = vmatpush1.msra.mxu0 0.0
      %606 = vmatprep.subr.mxu0 0.0
      %607 = vmatpush1.msra.mxu0 0.0
      %608 = vmatprep.subr.mxu0 0.0
      %609 = vmatpush1.msra.mxu0 0.0
      %610 = vmatprep.mubr.f32.mxu0 0.0
      %611 = vmatmul.mubr.f32.gmra.mrb[0].mxu0 %v541
      %v612 = vpop.f32.mrb[0].mxu0
      %v613 = vadd.f32 0.0, %v612
      %v614 = vpop.f32.mrb[0].mxu0
      %615 = vdwg.mxu0
      %v616 = vld [vmem:[%s4] sm:$0xff]
      %v617 = vld [vmem:[%s4 + $0x8] sm:$0xff]
      %619 = vset.pattern.permute.xlu0 0
      %620 = vperm.xlu0 %619, %v616
      %v621 = vpop.permute.xlu0 %620
      %624 = vset.pattern.permute.xlu0 0
      %625 = vperm.xlu0 %624, %v617
      %v626 = vpop.permute.xlu0 %625
      %v628 = vadd.f32 %v536, %v621
      %v629 = vadd.f32 %v613, %v626
      %vm630 = vcmask 523264
      %631 = vst.msk [vmem:[%s251] sm:$0xff] %vm630, %v628
      %632 = vst.msk [vmem:[%s251 + $0x8] sm:$0xff] %vm630, %v629
      %p633 = scmp.lt.s32.totalorder %s17, 1
      %s634 = scalar_select %p633, %s17, 1
      %s635 = smul.addr %s634, 2
      %s636 = smul.addr %s635, 8
      %s637 = scalar_lea.vmem %s6, %s636
      // Predicated region
      $region45: #{backbone_wrapper_forward.1} parent=43 // pred_check
        %p638 = pneg %p166
      $region46: #{backbone_wrapper_forward.1} parent=43 // pred_check_branch
        %640 = sbr.rel (%p638) target = $region48
      $region47: #{backbone_wrapper_forward.1} parent=43 // pred_region
        _
      $region48: #{backbone_wrapper_forward.1} parent=43 // pred_fallthru
        _
    $region44: #{backbone_wrapper_forward.1} parent=5 // pred_fallthru
      _
    %p641 = scmp.le.s32.totalorder 2, %s12
    // Predicated region
    $region49: #{backbone_wrapper_forward.1} parent=5 // pred_check
      %p642 = pneg %p641
    $region50: #{backbone_wrapper_forward.1} parent=5 // pred_check_branch
      %644 = sbr.rel (%p642) target = $region52
    $region51: #{backbone_wrapper_forward.1} parent=5 // pred_region
      %s645 = ssub.s32 %s12, 2
      // Predicated region
      $region53: #{backbone_wrapper_forward.1} parent=51 // pred_check
        %p646 = pneg %p172
      $region54: #{backbone_wrapper_forward.1} parent=51 // pred_check_branch
        %648 = sbr.rel (%p646) target = $region56
      $region55: #{backbone_wrapper_forward.1} parent=51 // pred_region
        %p649 = scmp.lt.s32.totalorder %s18, 1
        %s650 = scalar_select %p649, %s18, 1
        %s651 = smul.addr %s650, 2
        %s652 = smul.addr %s651, 8
        %s653 = scalar_lea.vmem %s6, %s652
      $region56: #{backbone_wrapper_forward.1} parent=51 // pred_fallthru
        _
    $region52: #{backbone_wrapper_forward.1} parent=5 // pred_fallthru
      _
  $region6: #{backbone_wrapper_forward.1} parent=0 // loop_footer
    %s16 = sadd.s32 1, %s12
  $region7: #{backbone_wrapper_forward.1} parent=0 // loop_footer_branch
    %11 = sbr.rel target = $region3
  $region8: #{backbone_wrapper_forward.1} parent=0 // loop_exit
    _

</llo_original>
